<compile_context>
chip_gen: v7x
topology: tpu7x:2x2x1
jax: 0.10.0
libtpu: 0.0.40
codegen_flags: <defaults>
</compile_context>

<pallas_src>
import functools

import jax
import jax.numpy as jnp
from jax import lax
from jax.experimental import pallas as pl
from jax.experimental.pallas import tpu as pltpu


# ------------------------------- helpers ------------------------------------

def _round_up(a, b):
    return ((a + b - 1) // b) * b


def _tpu_vmem_capacity_bytes():
    try:
        return int(pltpu.get_tpu_info().vmem_capacity_bytes)
    except Exception:
        return 64 * 1024 * 1024  # conservative (v7x-sized) fallback


_VMEM_CAP = _tpu_vmem_capacity_bytes()
_VMEM_LIMIT = int(_VMEM_CAP * 3 // 4)               # headroom for compiler scratch
_TM_MAX = 1024 if _VMEM_CAP >= (100 << 20) else 512  # bigger tiles on v5e/v6e


def _compiler_params(dim_sem):
    return pltpu.CompilerParams(dimension_semantics=dim_sem,
                                vmem_limit_bytes=_VMEM_LIMIT)


def _pick_tm(M, tm_max):
    """Largest 8-aligned divisor of M (<= tm_max), preferring >= 4 grid blocks
    so the auto-pipeline can hide input DMA and both v7x cores get work."""
    cands = [d for d in range(8, min(tm_max, M) + 1, 8) if M % d == 0]
    if not cands:
        return None
    for min_blocks in (4, 2):
        ok = [d for d in cands if M // d >= min_blocks]
        if ok:
            return ok[-1]
    return cands[-1]


def _pick_th(Ho, Wo, cout, acc_budget=4 << 20):
    """conv2 output-row tile: divisor of Ho with the f32 accumulator inside a
    small VMEM budget, preferring >= 4 row tiles per image."""
    divs = [d for d in range(1, Ho + 1) if Ho % d == 0]
    ok = [d for d in divs if d * Wo * cout * 4 <= acc_budget] or [1]
    for min_tiles in (4, 2):
        c = [d for d in ok if Ho // d >= min_tiles]
        if c:
            return c[-1]
    return ok[-1]


# ----------------------------- Pallas kernels --------------------------------

def _mm_bias_kernel(x_ref, w_ref, b_ref, o_ref, *, relu):
    # x:(tm,K) bf16, w:(K,Cout_p) bf16 (BN folded), b:(1,Cout_p) f32
    y = jnp.dot(x_ref[...], w_ref[...], preferred_element_type=jnp.float32)
    y = y + b_ref[...]
    if relu:
        y = jnp.maximum(y, 0.0)
    o_ref[...] = y[:, :o_ref.shape[-1]].astype(o_ref.dtype)


def _mm_bias_res_kernel(x_ref, w_ref, b_ref, r_ref, o_ref):
    # conv3 + identity residual + final ReLU (channel crop on store).
    y = jnp.dot(x_ref[...], w_ref[...], preferred_element_type=jnp.float32)
    y = y + b_ref[...] + r_ref[...].astype(jnp.float32)
    y = jnp.maximum(y, 0.0)
    o_ref[...] = y[:, :o_ref.shape[-1]].astype(o_ref.dtype)


def _mm_bias_short_kernel(x_ref, w_ref, b_ref, xs_ref, ws_ref, bs_ref, o_ref):
    # conv3 + shortcut 1x1 conv + residual add + final ReLU, fully fused.
    y = jnp.dot(x_ref[...], w_ref[...], preferred_element_type=jnp.float32)
    y = y + b_ref[...]
    y = y + jnp.dot(xs_ref[...], ws_ref[...], preferred_element_type=jnp.float32)
    y = y + bs_ref[...]
    y = jnp.maximum(y, 0.0)
    o_ref[...] = y[:, :o_ref.shape[-1]].astype(o_ref.dtype)


def _conv3x3_kernel(x_ref, w_ref, b_ref, o_ref, acc_ref, *, stride, dilation,
                    th, Wo):
    # x_ref:  (1, s*s (or 1), Hq, Wq, C)  image block (resident across row tiles)
    # w_ref:  (9, C, Cout_p) bf16         folded weights (grid-invariant)
    # b_ref:  (1, Cout_p) f32
    # o_ref:  (1, th, Wo, Cout_p) bf16    one output row tile
    # acc_ref:(th*Wo, Cout_p) f32         VMEM accumulator (reused every step)
    s = stride
    C = x_ref.shape[-1]
    base = pl.program_id(1) * th          # first output row of this tile
    first = True
    for ky in range(3):
        qy, ry = divmod(ky * dilation, s)
        for kx in range(3):
            qx, rx = divmod(kx * dilation, s)
            # shifted slice of the VMEM-resident image (no HBM im2col)
            patch = x_ref[0, ry * s + rx, pl.ds(base + qy, th), pl.ds(qx, Wo), :]
            tap = jnp.dot(patch.reshape(th * Wo, C), w_ref[ky * 3 + kx],
                          preferred_element_type=jnp.float32)
            if first:
                acc_ref[...] = tap
                first = False
            else:
                acc_ref[...] += tap
    y = jnp.maximum(acc_ref[...] + b_ref[...], 0.0)
    o_ref[0] = y.reshape(th, Wo, y.shape[-1]).astype(o_ref.dtype)


# --------------------------- pallas_call wrappers -----------------------------

def _matmul_call(x2d, w, bias2d, *, relu=True, residual=None, short=None,
                 out_cols=None):
    """Row-tiled 1x1-conv matmul (+bias [+residual | +shortcut matmul]) + ReLU.
    No wrapper-side row padding: tm divides M exactly (fallback pad only if
    M % 8 != 0, which does not occur for typical conv shapes)."""
    M, K = x2d.shape
    Coutp = w.shape[1]
    out_cols = Coutp if out_cols is None else out_cols

    tm = _pick_tm(M, _TM_MAX)
    pad_m = 0
    if tm is None:  # rare: M not a multiple of 8
        Mp = _round_up(M, 8)
        pad_m = Mp - M

        def pad_rows(a):
            return jnp.pad(a, ((0, pad_m), (0, 0)))

        x2d = pad_rows(x2d)
        if residual is not None:
            residual = pad_rows(residual)
        if short is not None:
            short = (pad_rows(short[0]), short[1], short[2])
        M = Mp
        tm = _pick_tm(M, _TM_MAX) or M
    grid_m = M // tm

    x_spec = pl.BlockSpec((tm, K), lambda i: (i, 0))
    w_spec = pl.BlockSpec((K, Coutp), lambda i: (0, 0))
    b_spec = pl.BlockSpec((1, Coutp), lambda i: (0, 0))
    out_spec = pl.BlockSpec((tm, out_cols), lambda i: (i, 0))

    if short is not None:
        xs, ws, bs = short
        Ks = xs.shape[1]
        kernel = _mm_bias_short_kernel
        in_specs = [x_spec, w_spec, b_spec,
                    pl.BlockSpec((tm, Ks), lambda i: (i, 0)),
                    pl.BlockSpec((Ks, ws.shape[1]), lambda i: (0, 0)),
                    pl.BlockSpec((1, ws.shape[1]), lambda i: (0, 0))]
        args = (x2d, w, bias2d, xs, ws, bs)
    elif residual is not None:
        kernel = _mm_bias_res_kernel
        in_specs = [x_spec, w_spec, b_spec,
                    pl.BlockSpec((tm, residual.shape[1]), lambda i: (i, 0))]
        args = (x2d, w, bias2d, residual)
    else:
        kernel = functools.partial(_mm_bias_kernel, relu=relu)
        in_specs = [x_spec, w_spec, b_spec]
        args = (x2d, w, bias2d)

    out = pl.pallas_call(
        kernel,
        out_shape=jax.ShapeDtypeStruct((M, out_cols), jnp.bfloat16),
        grid_spec=pltpu.PrefetchScalarGridSpec(
            num_scalar_prefetch=0,
            grid=(grid_m,),
            in_specs=in_specs,
            out_specs=out_spec,
        ),
        compiler_params=_compiler_params(("parallel",)),
    )(*args)
    return out[:M - pad_m] if pad_m else out


def _conv2_call(y, w9, bias2d, stride, dilation):
    """3x3 conv + BN + ReLU.  Grid (N, Ho/th): the image block is constant over
    the row-tile axis (fetched once per image), each step accumulates one row
    tile through 9 shifted-slice matmuls into a VMEM f32 scratch."""
    N, H1, W1, C = y.shape
    s, pad = stride, dilation            # module uses padding == dilation
    Ho = (H1 + 2 * pad - 2 * dilation - 1) // s + 1
    Wo = (W1 + 2 * pad - 2 * dilation - 1) // s + 1

    xp = jnp.pad(y, ((0, 0), (pad, pad), (pad, pad), (0, 0)))
    Hp, Wp = H1 + 2 * pad, W1 + 2 * pad
    if s == 1:
        # stride-1: space-to-depth is the identity -> skip the transpose pass
        Hq, Wq = Hp, Wp
        xt = xp.reshape(N, 1, Hp, Wp, C)
    else:
        Hq, Wq = -(-Hp // s), -(-Wp // s)
        xp = jnp.pad(xp, ((0, 0), (0, Hq * s - Hp), (0, Wq * s - Wp), (0, 0)))
        # space-to-depth: xt[n, ry*s+rx, i, j, c] == xp[n, i*s+ry, j*s+rx, c]
        xt = xp.reshape(N, Hq, s, Wq, s, C).transpose(0, 2, 4, 1, 3, 5)
        xt = xt.reshape(N, s * s, Hq, Wq, C)

    Cout = w9.shape[-1]
    th = _pick_th(Ho, Wo, Cout)
    n_rt = Ho // th
    kernel = functools.partial(_conv3x3_kernel, stride=s, dilation=dilation,
                               th=th, Wo=Wo)
    out = pl.pallas_call(
        kernel,
        out_shape=jax.ShapeDtypeStruct((N, Ho, Wo, Cout), jnp.bfloat16),
        grid_spec=pltpu.PrefetchScalarGridSpec(
            num_scalar_prefetch=0,
            grid=(N, n_rt),
            in_specs=[
                # whole (s2d) image for batch n; index is constant over the
                # row-tile axis so it is DMA'd once per image and reused.
                pl.BlockSpec((1, xt.shape[1], Hq, Wq, C),
                             lambda n, r: (n, 0, 0, 0, 0)),
                pl.BlockSpec((9, C, Cout), lambda n, r: (0, 0, 0)),
                pl.BlockSpec((1, Cout), lambda n, r: (0, 0)),
            ],
            out_specs=pl.BlockSpec((1, th, Wo, Cout), lambda n, r: (n, r, 0, 0)),
            scratch_shapes=[pltpu.VMEM((th * Wo, Cout), jnp.float32)],
        ),
        compiler_params=_compiler_params(("parallel", "arbitrary")),
    )(xt, w9, bias2d)
    return out, (Ho, Wo)


# ------------------------------ parameters ------------------------------------

def make_convbn_params(key, cin, cout, ksize):
    """Deterministic Conv2d + BatchNorm2d (eval) params.  BN scale folded into
    bf16 weights; channels zero-padded to multiples of 128 (lane-dense)."""
    kw, kb = jax.random.split(key)
    w = jax.random.normal(kw, (cout, cin, ksize, ksize), jnp.float32)
    w = w * (1.0 / (cin * ksize * ksize) ** 0.5)
    b = jax.random.normal(kb, (cout,), jnp.float32) * 0.1
    gamma = jnp.ones((cout,), jnp.float32)
    beta = jnp.zeros((cout,), jnp.float32)
    rmean = jnp.zeros((cout,), jnp.float32)
    rvar = jnp.ones((cout,), jnp.float32)
    eps = 1e-5
    scale = gamma / jnp.sqrt(rvar + eps)
    bias = beta + (b - rmean) * scale

    cin_p, cout_p = _round_up(cin, 128), _round_up(cout, 128)
    # fold BN scale into weights; (Cout,Cin,kH,kW) -> (kH,kW,Cin,Cout); pad; bf16
    wf = jnp.transpose(w * scale[:, None, None, None], (2, 3, 1, 0))
    wf = jnp.pad(wf, ((0, 0), (0, 0), (0, cin_p - cin), (0, cout_p - cout)))
    wf = wf.astype(jnp.bfloat16)
    bias2d = jnp.pad(bias, (0, cout_p - cout)).reshape(1, cout_p)
    bias2d = bias2d.astype(jnp.float32)

    d = dict(w=w, b=b, gamma=gamma, beta=beta, rmean=rmean, rvar=rvar, eps=eps,
             cin=cin, cout=cout, bias2d=bias2d)
    if ksize == 1:
        d['w2d'] = wf.reshape(cin_p, cout_p)
    else:
        d['w9'] = wf.reshape(ksize * ksize, cin_p, cout_p)
    return d


# ------------------------------ forward ---------------------------------------

def bottleneck_forward(x_nchw, params, stride=1, dilation=1):
    """Bottleneck forward.  Returns NCHW bf16 (kept bf16 to avoid doubling the
    final HBM write; upcast at the caller if f32 is required)."""
    x = jnp.transpose(x_nchw, (0, 2, 3, 1)).astype(jnp.bfloat16)  # NCHW -> NHWC
    N, H, W, Cin = x.shape
    Cin_p = _round_up(Cin, 128)
    if Cin_p != Cin:
        x = jnp.pad(x, ((0, 0), (0, 0), (0, 0), (0, Cin_p - Cin)))

    p1, p2, p3 = params['conv1'], params['conv2'], params['conv3']
    Cmid_p = p1['w2d'].shape[1]
    Cout = p3['cout']

    # conv1: 1x1 + BN + ReLU (row-tiled matmul, no activation padding copies)
    y = _matmul_call(x.reshape(N * H * W, Cin_p), p1['w2d'], p1['bias2d'],
                     relu=True)
    y = y.reshape(N, H, W, Cmid_p)

    # conv2: 3x3 (stride, dilation) + BN + ReLU, row-tiled with VMEM accumulator
    y, (Ho, Wo) = _conv2_call(y, p2['w9'], p2['bias2d'], stride, dilation)

    # conv3: 1x1 + BN, fused with shortcut conv / identity + add + final ReLU;
    # the channel crop (Cout_p -> Cout) happens inside the kernel store.
    M2 = N * Ho * Wo
    y2d = y.reshape(M2, Cmid_p)
    if 'short' in params:
        ps = params['short']
        xs = x[:, ::stride, ::stride, :].reshape(M2, Cin_p)  # 1x1 stride subsample
        out = _matmul_call(y2d, p3['w2d'], p3['bias2d'],
                           short=(xs, ps['w2d'], ps['bias2d']), out_cols=Cout)
    else:
        if stride != 1 or p1['cin'] != Cout:
            raise ValueError("identity shortcut requires stride==1 and Cin==Cout")
        out = _matmul_call(y2d, p3['w2d'], p3['bias2d'],
                           residual=x.reshape(M2, Cin_p), out_cols=Cout)

    out = out.reshape(N, Ho, Wo, Cout)
    return jnp.transpose(out, (0, 3, 1, 2))  # NCHW, bf16


# ---------------------------- pure-JAX reference ------------------------------

def _ref_convbn(x_nhwc, p, ksize, stride, padding, dilation, act):
    w_hwio = jnp.transpose(p['w'], (2, 3, 1, 0))
    y = lax.conv_general_dilated(
        x_nhwc, w_hwio, window_strides=(stride, stride),
        padding=[(padding, padding), (padding, padding)],
        rhs_dilation=(dilation, dilation),
        dimension_numbers=('NHWC', 'HWIO', 'NHWC'))
    y = y + p['b']
    y = (y - p['rmean']) / jnp.sqrt(p['rvar'] + p['eps']) * p['gamma'] + p['beta']
    if act:
        y = jnp.maximum(y, 0.0)
    return y


def bottleneck_ref(x_nchw, params, stride, dilation):
    x = jnp.transpose(x_nchw, (0, 2, 3, 1))
    y = _ref_convbn(x, params['conv1'], 1, 1, 0, 1, True)
    y = _ref_convbn(y, params['conv2'], 3, stride, dilation, dilation, True)
    y = _ref_convbn(y, params['conv3'], 1, 1, 0, 1, False)
    if 'short' in params:
        sc = _ref_convbn(x, params['short'], 1, stride, 0, 1, False)
    else:
        sc = x
    out = jnp.maximum(y + sc, 0.0)
    return jnp.transpose(out, (0, 3, 1, 2))


# --------------------------------- main ----------------------------------------

if __name__ == "__main__":
    def run_case(seed, N, Cin, H, W, Cmid, Cout, stride, dilation):
        key = jax.random.PRNGKey(seed)
        kx, k1, k2, k3, ks = jax.random.split(key, 5)
        x = jax.random.normal(kx, (N, Cin, H, W), jnp.float32)
        params = {
            'conv1': make_convbn_params(k1, Cin, Cmid, 1),
            'conv2': make_convbn_params(k2, Cmid, Cmid, 3),
            'conv3': make_convbn_params(k3, Cmid, Cout, 1),
        }
        if Cin != Cout or stride > 1:
            params['short'] = make_convbn_params(ks, Cin, Cout, 1)

        out = jax.block_until_ready(
            bottleneck_forward(x, params, stride=stride, dilation=dilation))
        ref = bottleneck_ref(x, params, stride, dilation)

        Ho = (H - 1) // stride + 1
        assert out.shape == (N, Cout, Ho, Ho), out.shape
        out_f32 = out.astype(jnp.float32)
        # bf16 operands with f32 accumulation vs. f32 reference
        assert jnp.allclose(out_f32, ref, atol=0.15, rtol=0.05), \
            float(jnp.max(jnp.abs(out_f32 - ref)))

    # shortcut-conv path (stride 2) and identity-residual path (stride 1, dil 2)
    run_case(0, 2, 8, 16, 16, 4, 16, 2, 1)
    run_case(0, 2, 16, 16, 16, 8, 16, 1, 2)

    print("KERNEL_OK")
</pallas_src>

<mosaic_0001>
module attributes {stable_mosaic.version = 11 : i64} {
  func.func @_mm_bias_kernel(%arg0: i32, %arg1: memref<128x128xbf16, #tpu.memory_space<vmem>>, %arg2: memref<128x128xbf16, #tpu.memory_space<vmem>>, %arg3: memref<1x128xf32, #tpu.memory_space<vmem>>, %arg4: memref<128x128xbf16, #tpu.memory_space<vmem>>) attributes {dimension_semantics = [#tpu.dimension_semantics<parallel>], iteration_bounds = array<i64: 4>, scalar_prefetch = 0 : i64, scratch_operands = 0 : i64, tpu.core_type = #tpu.core_type<tc>, window_params = [{transform_indices = @transform_0, window_bounds = array<i64: 128, 128>}, {pipeline_mode = #tpu.pipeline_mode<synchronous>, transform_indices = @transform_1, window_bounds = array<i64: 128, 128>}, {pipeline_mode = #tpu.pipeline_mode<synchronous>, transform_indices = @transform_2, window_bounds = array<i64: 1, 128>}, {transform_indices = @transform_3, window_bounds = array<i64: 128, 128>}]} {
    %c0 = arith.constant 0 : index
    %c0_0 = arith.constant 0 : index
    %0 = vector.load %arg1[%c0, %c0_0] : memref<128x128xbf16, #tpu.memory_space<vmem>>, vector<128x128xbf16>
    %c0_1 = arith.constant 0 : index
    %c0_2 = arith.constant 0 : index
    %1 = vector.load %arg2[%c0_1, %c0_2] : memref<128x128xbf16, #tpu.memory_space<vmem>>, vector<128x128xbf16>
    %cst = arith.constant dense<0.000000e+00> : vector<128x128xf32>
    %2 = tpu.matmul %0, %1, %cst {dimension_numbers = #tpu.dot_dimension_numbers<[1], [0], [0], [1], [0, 0, 1, 1], [], []>} : vector<128x128xbf16>, vector<128x128xbf16>, vector<128x128xf32> -> vector<128x128xf32>
    %c0_3 = arith.constant 0 : index
    %c0_4 = arith.constant 0 : index
    %3 = vector.load %arg3[%c0_3, %c0_4] : memref<1x128xf32, #tpu.memory_space<vmem>>, vector<1x128xf32>
    %4 = vector.broadcast %3 : vector<1x128xf32> to vector<128x128xf32>
    %5 = arith.addf %2, %4 : vector<128x128xf32>
    %cst_5 = arith.constant 0.000000e+00 : f32
    %6 = vector.broadcast %cst_5 : f32 to vector<128x128xf32>
    %7 = arith.maximumf %5, %6 : vector<128x128xf32>
    %8 = arith.truncf %7 : vector<128x128xf32> to vector<128x128xbf16>
    %c0_6 = arith.constant 0 : index
    %c0_7 = arith.constant 0 : index
    %9 = vector.load %arg4[%c0_6, %c0_7] : memref<128x128xbf16, #tpu.memory_space<vmem>>, vector<128x128xbf16>
    tpu.vector_store %arg4[%c0_6, %c0_7], %8 {strides = array<i32>} : memref<128x128xbf16, #tpu.memory_space<vmem>>, vector<128x128xbf16>,
    return
  }
  func.func @transform_0(%arg0: i32) -> (i32, i32) {
    %c0_i32 = arith.constant 0 : i32
    %c0_i32_0 = arith.constant 0 : i32
    return %arg0, %c0_i32 : i32, i32
  }
  func.func @transform_1(%arg0: i32) -> (i32, i32) {
    %c0_i32 = arith.constant 0 : i32
    %c0_i32_0 = arith.constant 0 : i32
    %c0_i32_1 = arith.constant 0 : i32
    return %c0_i32, %c0_i32_0 : i32, i32
  }
  func.func @transform_2(%arg0: i32) -> (i32, i32) {
    %c0_i32 = arith.constant 0 : i32
    %c0_i32_0 = arith.constant 0 : i32
    %c0_i32_1 = arith.constant 0 : i32
    return %c0_i32, %c0_i32_0 : i32, i32
  }
  func.func @transform_3(%arg0: i32) -> (i32, i32) {
    %c0_i32 = arith.constant 0 : i32
    %c0_i32_0 = arith.constant 0 : i32
    return %arg0, %c0_i32 : i32, i32
  }
}

</mosaic_0001>

<llo_original>
// kernel: tpu_custom_call.1
$region0: #{tpu_custom_call.1}
  #allocation0 [shape = 'u32[]', space=smem, size = 0x4, offset = 0x4, fixed_abs, tag = 'smem constant byte address 0x4 - core index']
  #allocation1 [shape = 'u32[144,128]{1,0:T(1,128)}', space=vmem, size = 0x12000, scoped, tag = 'internal scratch']
  %s0 = inlined_call_operand.hbm [shape: bf16[512,128], index: 0, kind: input, shape index: {}]
  %s1 = inlined_call_operand.hbm [shape: bf16[128,128], index: 1, kind: input, shape index: {}]
  %s2 = inlined_call_operand.vmem [shape: f32[1,128], index: 2, kind: input, shape index: {}]
  %s3 = inlined_call_operand.hbm [shape: bf16[512,128], index: 3, kind: output, shape index: {}]
  %s4 = sld [smem:[#allocation0]]
  $region53: #{tpu_custom_call.1} parent=0
    _
  %s6 = ssub.s32 1, %s4
  %s7 = scalar_select 0, %s6, %s4
  $region1: #{tpu_custom_call.1} parent=0
    #allocation2 [shape = 'u8[65536]{0}', space=vmem, size = 0x10000, scoped, tag = 'input window, operand 0']
    #allocation3 [shape = 's32[2]{0}', space=sflag, size = 0x8, scoped, tag = 'scoped memory for tpu_custom_call.1']
    #allocation4 [shape = 's32[2]{0}', space=sflag, size = 0x8, scoped, tag = 'scoped memory for tpu_custom_call.1']
    #allocation5 [shape = 'u8[32768]{0}', space=vmem, size = 0x8000, scoped, tag = 'input window, operand 1, single buffered']
    #allocation6 [shape = 's32[1]{0}', space=sflag, size = 0x4, scoped, tag = 'scoped memory for tpu_custom_call.1']
    #allocation7 [shape = 'u8[65536]{0}', space=vmem, size = 0x10000, scoped, tag = 'output window, operand 0']
    %8 = vsyncpa [#allocation3], 0
    %s9 = scalar_lea.sflag [#allocation3], 1
    %10 = vsyncpa %s9, 0
    %11 = vsyncpa [#allocation6], 0
    %12 = vsyncpa [#allocation4], 0
    %s13 = scalar_lea.sflag [#allocation4], 1
    %14 = vsyncpa %s13, 0
    loop: start=0, step=1, limit=6
    $region2: #{tpu_custom_call.1} parent=1 // loop_pre_header
      _
    $region3: #{tpu_custom_call.1} parent=1 // loop_header
      %s16 = sphi 0, %s20
      %p17 = scmp.ge.s32.totalorder %s16, 6
      %s26 = sphi 0, %s28
      %s29 = sphi 0, %s26
      %s30 = sphi 0, %s29
      %s46 = sphi 0, %s30
      %s50 = sphi 0, %s50
      %s52 = sphi 0, %s50
      %s53 = sphi 0, %s52
      %s67 = sphi 0, %s53
      %s71 = sphi 0, %s71
      %s73 = sphi 0, %s71
      %s74 = sphi 0, %s73
      %s88 = sphi 0, %s74
      %s94 = sphi 0, %s96
      %s97 = sphi 0, %s94
      %s98 = sphi 0, %s97
      %s114 = sphi 0, %s98
    $region4: #{tpu_custom_call.1} parent=1 // loop_header_branch
      %19 = sbr.rel (%p17) target = $region8
    $region5: #{tpu_custom_call.1} parent=1 // loop_body
      %s21 = ssub.s32 %s16, 1
      %s22 = ssub.s32 %s16, 2
      %s23 = sadd.s32 %s16, 1
      %s24 = ssub.s32 %s16, %s23
      %p25 = scmp.eq.s32.totalorder %s24, 0
      %s27 = sadd.s32 %s26, 1
      %s28 = scalar_select %p25, %s26, %s27
      %p31 = pneg %p25
      %p32 = scmp.eq.s32.totalorder %s16, 3
      %p33 = por %p31, %p32
      %p34 = scmp.ne.s32.totalorder %s26, %s29
      %p35 = scmp.eq.s32.totalorder %s16, 0
      %p36 = por %p34, %p35
      %p37 = scmp.ne.s32.totalorder %s26, %s29
      %p38 = scmp.eq.s32.totalorder %s21, 3
      %p39 = por %p37, %p38
      %p40 = scmp.ne.s32.totalorder %s29, %s30
      %p41 = scmp.eq.s32.totalorder %s21, 0
      %p42 = por %p40, %p41
      %p43 = scmp.ne.s32.totalorder %s29, %s30
      %p44 = scmp.eq.s32.totalorder %s22, 3
      %p45 = por %p43, %p44
      %p47 = scmp.ne.s32.totalorder %s30, %s46
      %p48 = scmp.eq.s32.totalorder %s22, 0
      %p49 = por %p47, %p48
      %s51 = sadd.s32 %s50, 1
      %p54 = scmp.eq.s32.totalorder %s16, 3
      %p55 = scmp.ne.s32.totalorder %s50, %s52
      %p56 = scmp.eq.s32.totalorder %s16, 0
      %p57 = por %p55, %p56
      %p58 = scmp.ne.s32.totalorder %s50, %s52
      %p59 = scmp.eq.s32.totalorder %s21, 3
      %p60 = por %p58, %p59
      %p61 = scmp.ne.s32.totalorder %s52, %s53
      %p62 = scmp.eq.s32.totalorder %s21, 0
      %p63 = por %p61, %p62
      %p64 = scmp.ne.s32.totalorder %s52, %s53
      %p65 = scmp.eq.s32.totalorder %s22, 3
      %p66 = por %p64, %p65
      %p68 = scmp.ne.s32.totalorder %s53, %s67
      %p69 = scmp.eq.s32.totalorder %s22, 0
      %p70 = por %p68, %p69
      %s72 = sadd.s32 %s71, 1
      %p75 = scmp.eq.s32.totalorder %s16, 3
      %p76 = scmp.ne.s32.totalorder %s71, %s73
      %p77 = scmp.eq.s32.totalorder %s16, 0
      %p78 = por %p76, %p77
      %p79 = scmp.ne.s32.totalorder %s71, %s73
      %p80 = scmp.eq.s32.totalorder %s21, 3
      %p81 = por %p79, %p80
      %p82 = scmp.ne.s32.totalorder %s73, %s74
      %p83 = scmp.eq.s32.totalorder %s21, 0
      %p84 = por %p82, %p83
      %p85 = scmp.ne.s32.totalorder %s73, %s74
      %p86 = scmp.eq.s32.totalorder %s22, 3
      %p87 = por %p85, %p86
      %p89 = scmp.ne.s32.totalorder %s74, %s88
      %p90 = scmp.eq.s32.totalorder %s22, 0
      %p91 = por %p89, %p90
      %s92 = ssub.s32 %s16, %s23
      %p93 = scmp.eq.s32.totalorder %s92, 0
      %s95 = sadd.s32 %s94, 1
      %s96 = scalar_select %p93, %s94, %s95
      %p99 = pneg %p93
      %p100 = scmp.eq.s32.totalorder %s16, 3
      %p101 = por %p99, %p100
      %p102 = scmp.ne.s32.totalorder %s94, %s97
      %p103 = scmp.eq.s32.totalorder %s16, 0
      %p104 = por %p102, %p103
      %p105 = scmp.ne.s32.totalorder %s94, %s97
      %p106 = scmp.eq.s32.totalorder %s21, 3
      %p107 = por %p105, %p106
      %p108 = scmp.ne.s32.totalorder %s97, %s98
      %p109 = scmp.eq.s32.totalorder %s21, 0
      %p110 = por %p108, %p109
      %p111 = scmp.ne.s32.totalorder %s97, %s98
      %p112 = scmp.eq.s32.totalorder %s22, 3
      %p113 = por %p111, %p112
      %p115 = scmp.ne.s32.totalorder %s98, %s114
      %p116 = scmp.eq.s32.totalorder %s22, 0
      %p117 = por %p115, %p116
      %p118 = scmp.le.s32.totalorder 1, %s16
      %p119 = scmp.lt.s32.totalorder %s16, 5
      %p120 = pnand %p118, %p119
      %p121 = pneg %p120
      // Predicated region
      $region9: #{tpu_custom_call.1} parent=5 // pred_check
        _
      $region10: #{tpu_custom_call.1} parent=5 // pred_check_branch
        %123 = sbr.rel (%p120) target = $region12
      $region11: #{tpu_custom_call.1} parent=5 // pred_region
        %s124 = ssub.s32 %s16, 1
        // Predicated region
        $region13: #{tpu_custom_call.1} parent=11 // pred_check
          %p125 = pneg %p63
        $region14: #{tpu_custom_call.1} parent=11 // pred_check_branch
          %127 = sbr.rel (%p125) target = $region16
        $region15: #{tpu_custom_call.1} parent=11 // pred_region
          %s129 = ssub.s32 1024, 1024
          %130 = vsyncadd [#allocation6], %s129
          %s131 = sshll.u32 [#allocation5], 4
          %s132 = int_to_ptr.vmem [resolvable:$true] %s131
          %137 = dma.hbm_to_vmem [thread:$0]  %s1, 1024, %s132, [#allocation6], 64, 64, 4
        $region16: #{tpu_custom_call.1} parent=11 // pred_fallthru
          _
        // Predicated region
        $region17: #{tpu_custom_call.1} parent=11 // pred_check
          %p138 = pneg %p84
        $region18: #{tpu_custom_call.1} parent=11 // pred_check_branch
          %140 = sbr.rel (%p138) target = $region20
        $region19: #{tpu_custom_call.1} parent=11 // pred_region
          _
        $region20: #{tpu_custom_call.1} parent=11 // pred_fallthru
          _
      $region12: #{tpu_custom_call.1} parent=5 // pred_fallthru
        _
      %p141 = scmp.lt.s32.totalorder %s16, 4
      // Predicated region
      $region21: #{tpu_custom_call.1} parent=5 // pred_check
        %p142 = pneg %p141
      $region22: #{tpu_custom_call.1} parent=5 // pred_check_branch
        %144 = sbr.rel (%p142) target = $region24
      $region23: #{tpu_custom_call.1} parent=5 // pred_region
        // Predicated region
        $region25: #{tpu_custom_call.1} parent=23 // pred_check
          %p145 = pneg %p36
        $region26: #{tpu_custom_call.1} parent=23 // pred_check_branch
          %147 = sbr.rel (%p145) target = $region28
        $region27: #{tpu_custom_call.1} parent=23 // pred_region
          %s148 = sand.u32 %s26, 1
          %s149 = scalar_lea.sflag [#allocation3], %s148
          %s150 = sand.u32 %s26, 1
          %s151 = smul.addr %s150, 64
          %s152 = scalar_lea.vmem [#allocation2], %s151
          %s153 = smul.u32 16, %s16
          %s155 = ssub.s32 1024, 1024
          %156 = vsyncadd %s149, %s155
          %s157 = smul.addr %s153, 64
          %s158 = scalar_lea.hbm %s0, %s157
          %s159 = sshll.u32 %s152, 4
          %s160 = int_to_ptr.vmem [resolvable:$true] %s159
          %165 = dma.hbm_to_vmem [thread:$0]  %s158, 1024, %s160, %s149, 64, 64, 4
        $region28: #{tpu_custom_call.1} parent=23 // pred_fallthru
          _
      $region24: #{tpu_custom_call.1} parent=5 // pred_fallthru
        _
      %p166 = scmp.le.s32.totalorder 1, %s16
      %p167 = scmp.lt.s32.totalorder %s16, 5
      %p168 = pnand %p166, %p167
      %p169 = pneg %p168
      // Predicated region
      $region29: #{tpu_custom_call.1} parent=5 // pred_check
        _
      $region30: #{tpu_custom_call.1} parent=5 // pred_check_branch
        %171 = sbr.rel (%p168) target = $region32
      $region31: #{tpu_custom_call.1} parent=5 // pred_region
        %s172 = ssub.s32 %s16, 1
        %s173 = sand.u32 %s29, 1
        %s174 = scalar_lea.sflag [#allocation3], %s173
        %s175 = sand.u32 %s29, 1
        %s176 = smul.addr %s175, 64
        %s177 = scalar_lea.vmem [#allocation2], %s176
        // Predicated region
        $region33: #{tpu_custom_call.1} parent=31 // pred_check
          %p178 = pneg %p42
        $region34: #{tpu_custom_call.1} parent=31 // pred_check_branch
          %180 = sbr.rel (%p178) target = $region36
        $region35: #{tpu_custom_call.1} parent=31 // pred_region
          %181 = dma.done %s174, 1024
        $region36: #{tpu_custom_call.1} parent=31 // pred_fallthru
          _
        // Predicated region
        $region37: #{tpu_custom_call.1} parent=31 // pred_check
          %p182 = pneg %p63
        $region38: #{tpu_custom_call.1} parent=31 // pred_check_branch
          %184 = sbr.rel (%p182) target = $region40
        $region39: #{tpu_custom_call.1} parent=31 // pred_region
          %185 = dma.done [#allocation6], 1024
        $region40: #{tpu_custom_call.1} parent=31 // pred_fallthru
          _
        %s186 = sand.u32 %s29, 1
        %s187 = scalar_lea.sflag [#allocation3], %s186
        %s188 = sand.u32 %s29, 1
        %s189 = smul.addr %s188, 64
        %s190 = scalar_lea.vmem [#allocation2], %s189
        %p191 = pneg %p42
        %p192 = pneg %p39
        %p193 = pneg %p63
        %p194 = pneg %p60
        %p195 = pneg %p84
        %p196 = pneg %p81
        %p197 = pneg %p110
        %p198 = pneg %p107
        %s199 = sand.u32 %s97, 1
        %s200 = scalar_lea.sflag [#allocation4], %s199
        %s201 = sand.u32 %s97, 1
        %s202 = smul.addr %s201, 64
        %s203 = scalar_lea.vmem [#allocation7], %s202
        %s204 = smul.u32 16, %s21
        %s205 = smul.u32 16, %s21
        %v207 = vld [vmem:[%s177] sm:$0xf]
        %v208 = vld [vmem:[%s177 + $0x4] sm:$0xf]
        %v209 = vld [vmem:[%s177 + $0x8] sm:$0xf]
        %v210 = vld [vmem:[%s177 + $0xc] sm:$0xf]
        %v211 = vld [vmem:[%s177 + $0x10] sm:$0xf]
        %v212 = vld [vmem:[%s177 + $0x14] sm:$0xf]
        %v213 = vld [vmem:[%s177 + $0x18] sm:$0xf]
        %v214 = vld [vmem:[%s177 + $0x1c] sm:$0xf]
        %v215 = vld [vmem:[%s177 + $0x20] sm:$0xf]
        %v216 = vld [vmem:[%s177 + $0x24] sm:$0xf]
        %v217 = vld [vmem:[%s177 + $0x28] sm:$0xf]
        %v218 = vld [vmem:[%s177 + $0x2c] sm:$0xf]
        %v219 = vld [vmem:[%s177 + $0x30] sm:$0xf]
        %v220 = vld [vmem:[%s177 + $0x34] sm:$0xf]
        %v221 = vld [vmem:[%s177 + $0x38] sm:$0xf]
        %v222 = vld [vmem:[%s177 + $0x3c] sm:$0xf]
        %v223 = vld [vmem:[#allocation5] sm:$0xf]
        %v224 = vld [vmem:[#allocation5 + $0x4] sm:$0xf]
        %v225 = vld [vmem:[#allocation5 + $0x8] sm:$0xf]
        %v226 = vld [vmem:[#allocation5 + $0xc] sm:$0xf]
        %v227 = vld [vmem:[#allocation5 + $0x10] sm:$0xf]
        %v228 = vld [vmem:[#allocation5 + $0x14] sm:$0xf]
        %v229 = vld [vmem:[#allocation5 + $0x18] sm:$0xf]
        %v230 = vld [vmem:[#allocation5 + $0x1c] sm:$0xf]
        %v231 = vld [vmem:[#allocation5 + $0x20] sm:$0xf]
        %v232 = vld [vmem:[#allocation5 + $0x24] sm:$0xf]
        %v233 = vld [vmem:[#allocation5 + $0x28] sm:$0xf]
        %v234 = vld [vmem:[#allocation5 + $0x2c] sm:$0xf]
        %v235 = vld [vmem:[#allocation5 + $0x30] sm:$0xf]
        %v236 = vld [vmem:[#allocation5 + $0x34] sm:$0xf]
        %v237 = vld [vmem:[#allocation5 + $0x38] sm:$0xf]
        %v238 = vld [vmem:[#allocation5 + $0x3c] sm:$0xf]
        %v239 = vld [vmem:[%s2] sm:$0x1]
        %v241 = vlaneseq
        %v242 = vshrl.u32 %v241, 7
        %v243 = vsub.s32 0, %v242
        %v244 = vrot.slane %v239, %v243
        %v262 = vunpack.c.l.b16 %v207
        %v263 = vunpack.c.l.b16 %v208
        %v264 = vunpack.c.l.b16 %v209
        %v265 = vunpack.c.l.b16 %v210
        %v266 = vunpack.c.l.b16 %v211
        %v267 = vunpack.c.l.b16 %v212
        %v268 = vunpack.c.l.b16 %v213
        %v269 = vunpack.c.l.b16 %v214
        %v270 = vunpack.c.l.b16 %v215
        %v271 = vunpack.c.l.b16 %v216
        %v272 = vunpack.c.l.b16 %v217
        %v273 = vunpack.c.l.b16 %v218
        %v274 = vunpack.c.l.b16 %v219
        %v275 = vunpack.c.l.b16 %v220
        %v276 = vunpack.c.l.b16 %v221
        %v277 = vunpack.c.l.b16 %v222
        %v278 = vpack.c.b16 %v263, %v262
        %v279 = vpack.c.b16 %v265, %v264
        %v280 = vpack.c.b16 %v267, %v266
        %v281 = vpack.c.b16 %v269, %v268
        %v282 = vpack.c.b16 %v271, %v270
        %v283 = vpack.c.b16 %v273, %v272
        %v284 = vpack.c.b16 %v275, %v274
        %v285 = vpack.c.b16 %v277, %v276
        %v310 = vunpack.c.l.b16 %v223
        %v311 = vunpack.c.l.b16 %v224
        %v312 = vunpack.c.l.b16 %v225
        %v313 = vunpack.c.l.b16 %v226
        %v314 = vunpack.c.l.b16 %v227
        %v315 = vunpack.c.l.b16 %v228
        %v316 = vunpack.c.l.b16 %v229
        %v317 = vunpack.c.l.b16 %v230
        %v318 = vunpack.c.l.b16 %v231
        %v319 = vunpack.c.l.b16 %v232
        %v320 = vunpack.c.l.b16 %v233
        %v321 = vunpack.c.l.b16 %v234
        %v322 = vunpack.c.l.b16 %v235
        %v323 = vunpack.c.l.b16 %v236
        %v324 = vunpack.c.l.b16 %v237
        %v325 = vunpack.c.l.b16 %v238
        %v326 = vpack.c.b16 %v311, %v310
        %v327 = vpack.c.b16 %v313, %v312
        %v328 = vpack.c.b16 %v315, %v314
        %v329 = vpack.c.b16 %v317, %v316
        %v330 = vpack.c.b16 %v319, %v318
        %v331 = vpack.c.b16 %v321, %v320
        %v332 = vpack.c.b16 %v323, %v322
        %v333 = vpack.c.b16 %v325, %v324
        %342 = vmatprep.subr.bf16.mxu0 0
        %343 = vmatpush1.bf16.msra.mxu0 %v326
        %344 = vmatprep.subr.bf16.mxu0 0
        %345 = vmatpush1.bf16.msra.mxu0 %v327
        %346 = vmatprep.subr.bf16.mxu0 0
        %347 = vmatpush1.bf16.msra.mxu0 %v328
        %348 = vmatprep.subr.bf16.mxu0 0
        %349 = vmatpush1.bf16.msra.mxu0 %v329
        %350 = vmatprep.subr.bf16.mxu0 0
        %351 = vmatpush1.bf16.msra.mxu0 %v330
        %352 = vmatprep.subr.bf16.mxu0 0
        %353 = vmatpush1.bf16.msra.mxu0 %v331
        %354 = vmatprep.subr.bf16.mxu0 0
        %355 = vmatpush1.bf16.msra.mxu0 %v332
        %356 = vmatprep.subr.bf16.mxu0 0
        %357 = vmatpush1.bf16.msra.mxu0 %v333
        %358 = vmatprep.subr.bf16.mxu0 0
        %359 = vmatpush1.bf16.msra.mxu0 0
        %360 = vmatprep.subr.bf16.mxu0 0
        %361 = vmatpush1.bf16.msra.mxu0 0
        %362 = vmatprep.subr.bf16.mxu0 0
        %363 = vmatpush1.bf16.msra.mxu0 0
        %364 = vmatprep.subr.bf16.mxu0 0
        %365 = vmatpush1.bf16.msra.mxu0 0
        %366 = vmatprep.subr.bf16.mxu0 0
        %367 = vmatpush1.bf16.msra.mxu0 0
        %368 = vmatprep.subr.bf16.mxu0 0
        %369 = vmatpush1.bf16.msra.mxu0 0
        %370 = vmatprep.subr.bf16.mxu0 0
        %371 = vmatpush1.bf16.msra.mxu0 0
        %372 = vmatprep.subr.bf16.mxu0 0
        %373 = vmatpush1.bf16.msra.mxu0 0
        %374 = vmatprep.mubr.bf16.mxu0 0
        %375 = vmatmul.mubr.bf16.gmra.mrb[0].mxu0 %v278
        %v376 = vpop.f32.mrb[0].mxu0
        %v377 = vadd.f32 %v244, %v376
        %v378 = vpop.f32.mrb[0].mxu0
        %v379 = vpop.f32.mrb[0].mxu0
        %v380 = vadd.f32 %v244, %v379
        %v381 = vpop.f32.mrb[0].mxu0
        %382 = vmatprep.mubr.bf16.mxu0 0
        %383 = vmatmul.mubr.bf16.gmra.mrb[0].mxu0 %v279
        %v384 = vpop.f32.mrb[0].mxu0
        %v385 = vadd.f32 %v244, %v384
        %v386 = vpop.f32.mrb[0].mxu0
        %v387 = vpop.f32.mrb[0].mxu0
        %v388 = vadd.f32 %v244, %v387
        %v389 = vpop.f32.mrb[0].mxu0
        %390 = vmatprep.mubr.bf16.mxu0 0
        %391 = vmatmul.mubr.bf16.gmra.mrb[0].mxu0 %v280
        %v392 = vpop.f32.mrb[0].mxu0
        %v393 = vadd.f32 %v244, %v392
        %v394 = vpop.f32.mrb[0].mxu0
        %v395 = vpop.f32.mrb[0].mxu0
        %v396 = vadd.f32 %v244, %v395
        %v397 = vpop.f32.mrb[0].mxu0
        %398 = vmatprep.mubr.bf16.mxu0 0
        %399 = vmatmul.mubr.bf16.gmra.mrb[0].mxu0 %v281
        %v400 = vpop.f32.mrb[0].mxu0
        %v401 = vadd.f32 %v244, %v400
        %v402 = vpop.f32.mrb[0].mxu0
        %v403 = vpop.f32.mrb[0].mxu0
        %v404 = vadd.f32 %v244, %v403
        %v405 = vpop.f32.mrb[0].mxu0
        %406 = vmatprep.mubr.bf16.mxu0 0
        %407 = vmatmul.mubr.bf16.gmra.mrb[0].mxu0 %v282
        %v408 = vpop.f32.mrb[0].mxu0
        %v409 = vadd.f32 %v244, %v408
        %v410 = vpop.f32.mrb[0].mxu0
        %v411 = vpop.f32.mrb[0].mxu0
        %v412 = vadd.f32 %v244, %v411
        %v413 = vpop.f32.mrb[0].mxu0
        %414 = vmatprep.mubr.bf16.mxu0 0
        %415 = vmatmul.mubr.bf16.gmra.mrb[0].mxu0 %v283
        %v416 = vpop.f32.mrb[0].mxu0
        %v417 = vadd.f32 %v244, %v416
        %v418 = vpop.f32.mrb[0].mxu0
        %v419 = vpop.f32.mrb[0].mxu0
        %v420 = vadd.f32 %v244, %v419
        %v421 = vpop.f32.mrb[0].mxu0
        %422 = vmatprep.mubr.bf16.mxu0 0
        %423 = vmatmul.mubr.bf16.gmra.mrb[0].mxu0 %v284
        %v424 = vpop.f32.mrb[0].mxu0
        %v425 = vadd.f32 %v244, %v424
        %v426 = vpop.f32.mrb[0].mxu0
        %v427 = vpop.f32.mrb[0].mxu0
        %v428 = vadd.f32 %v244, %v427
        %v429 = vpop.f32.mrb[0].mxu0
        %430 = vmatprep.mubr.bf16.mxu0 0
        %431 = vmatmul.mubr.bf16.gmra.mrb[0].mxu0 %v285
        %v432 = vpop.f32.mrb[0].mxu0
        %v433 = vadd.f32 %v244, %v432
        %v434 = vpop.f32.mrb[0].mxu0
        %v435 = vpop.f32.mrb[0].mxu0
        %v436 = vadd.f32 %v244, %v435
        %v437 = vpop.f32.mrb[0].mxu0
        %438 = vdwg.mxu0
        %v439 = vmax.f32 %v377, 0.0
        %v440 = vmax.f32 %v380, 0.0
        %v441 = vmax.f32 %v385, 0.0
        %v442 = vmax.f32 %v388, 0.0
        %v443 = vmax.f32 %v393, 0.0
        %v444 = vmax.f32 %v396, 0.0
        %v445 = vmax.f32 %v401, 0.0
        %v446 = vmax.f32 %v404, 0.0
        %v447 = vmax.f32 %v409, 0.0
        %v448 = vmax.f32 %v412, 0.0
        %v449 = vmax.f32 %v417, 0.0
        %v450 = vmax.f32 %v420, 0.0
        %v451 = vmax.f32 %v425, 0.0
        %v452 = vmax.f32 %v428, 0.0
        %v453 = vmax.f32 %v433, 0.0
        %v454 = vmax.f32 %v436, 0.0
        %v455 = vpack.c.bf16 %v440, %v439
        %v456 = vpack.c.bf16 %v442, %v441
        %v457 = vpack.c.bf16 %v444, %v443
        %v458 = vpack.c.bf16 %v446, %v445
        %v459 = vpack.c.bf16 %v448, %v447
        %v460 = vpack.c.bf16 %v450, %v449
        %v461 = vpack.c.bf16 %v452, %v451
        %v462 = vpack.c.bf16 %v454, %v453
        %v471 = vunpack.c.l.b16 %v455
        %v472 = vunpack.c.h.b16 %v455
        %v473 = vunpack.c.l.b16 %v456
        %v474 = vunpack.c.h.b16 %v456
        %v475 = vunpack.c.l.b16 %v457
        %v476 = vunpack.c.h.b16 %v457
        %v477 = vunpack.c.l.b16 %v458
        %v478 = vunpack.c.h.b16 %v458
        %v479 = vunpack.c.l.b16 %v459
        %v480 = vunpack.c.h.b16 %v459
        %v481 = vunpack.c.l.b16 %v460
        %v482 = vunpack.c.h.b16 %v460
        %v483 = vunpack.c.l.b16 %v461
        %v484 = vunpack.c.h.b16 %v461
        %v485 = vunpack.c.l.b16 %v462
        %v486 = vunpack.c.h.b16 %v462
        %v487 = vpack.c.b16 %v471, %v471
        %v488 = vpack.c.b16 %v472, %v472
        %v489 = vpack.c.b16 %v473, %v473
        %v490 = vpack.c.b16 %v474, %v474
        %v491 = vpack.c.b16 %v475, %v475
        %v492 = vpack.c.b16 %v476, %v476
        %v493 = vpack.c.b16 %v477, %v477
        %v494 = vpack.c.b16 %v478, %v478
        %v495 = vpack.c.b16 %v479, %v479
        %v496 = vpack.c.b16 %v480, %v480
        %v497 = vpack.c.b16 %v481, %v481
        %v498 = vpack.c.b16 %v482, %v482
        %v499 = vpack.c.b16 %v483, %v483
        %v500 = vpack.c.b16 %v484, %v484
        %v501 = vpack.c.b16 %v485, %v485
        %v502 = vpack.c.b16 %v486, %v486
        %519 = vst [vmem:[%s203] sm:$0xf] %v487
        %520 = vst [vmem:[%s203 + $0x4] sm:$0xf] %v488
        %521 = vst [vmem:[%s203 + $0x8] sm:$0xf] %v489
        %522 = vst [vmem:[%s203 + $0xc] sm:$0xf] %v490
        %523 = vst [vmem:[%s203 + $0x10] sm:$0xf] %v491
        %524 = vst [vmem:[%s203 + $0x14] sm:$0xf] %v492
        %525 = vst [vmem:[%s203 + $0x18] sm:$0xf] %v493
        %526 = vst [vmem:[%s203 + $0x1c] sm:$0xf] %v494
        %527 = vst [vmem:[%s203 + $0x20] sm:$0xf] %v495
        %528 = vst [vmem:[%s203 + $0x24] sm:$0xf] %v496
        %529 = vst [vmem:[%s203 + $0x28] sm:$0xf] %v497
        %530 = vst [vmem:[%s203 + $0x2c] sm:$0xf] %v498
        %531 = vst [vmem:[%s203 + $0x30] sm:$0xf] %v499
        %532 = vst [vmem:[%s203 + $0x34] sm:$0xf] %v500
        %533 = vst [vmem:[%s203 + $0x38] sm:$0xf] %v501
        %534 = vst [vmem:[%s203 + $0x3c] sm:$0xf] %v502
        %s535 = sand.u32 %s97, 1
        %s536 = scalar_lea.sflag [#allocation4], %s535
        %s537 = sand.u32 %s97, 1
        %s538 = smul.addr %s537, 64
        %s539 = scalar_lea.vmem [#allocation7], %s538
        // Predicated region
        $region41: #{tpu_custom_call.1} parent=31 // pred_check
          %p540 = pneg %p107
        $region42: #{tpu_custom_call.1} parent=31 // pred_check_branch
          %542 = sbr.rel (%p540) target = $region44
        $region43: #{tpu_custom_call.1} parent=31 // pred_region
          %s543 = smul.u32 16, %s21
          %s545 = ssub.s32 1024, 1024
          %546 = vsyncadd %s536, %s545
          %s547 = smul.addr %s543, 64
          %s548 = scalar_lea.hbm %s3, %s547
          %s549 = sshll.u32 %s539, 4
          %s550 = int_to_ptr.vmem [resolvable:$true] %s549
          %555 = dma.vmem_to_hbm [thread:$0]  %s550, 1024, %s548, %s536, 64, 64, 4
        $region44: #{tpu_custom_call.1} parent=31 // pred_fallthru
          _
      $region32: #{tpu_custom_call.1} parent=5 // pred_fallthru
        _
      %p556 = scmp.le.s32.totalorder 2, %s16
      // Predicated region
      $region45: #{tpu_custom_call.1} parent=5 // pred_check
        %p557 = pneg %p556
      $region46: #{tpu_custom_call.1} parent=5 // pred_check_branch
        %559 = sbr.rel (%p557) target = $region48
      $region47: #{tpu_custom_call.1} parent=5 // pred_region
        %s560 = ssub.s32 %s16, 2
        // Predicated region
        $region49: #{tpu_custom_call.1} parent=47 // pred_check
          %p561 = pneg %p113
        $region50: #{tpu_custom_call.1} parent=47 // pred_check_branch
          %563 = sbr.rel (%p561) target = $region52
        $region51: #{tpu_custom_call.1} parent=47 // pred_region
          %s564 = sand.u32 %s98, 1
          %s565 = scalar_lea.sflag [#allocation4], %s564
          %s566 = sand.u32 %s98, 1
          %s567 = smul.addr %s566, 64
          %s568 = scalar_lea.vmem [#allocation7], %s567
          %569 = dma.done %s565, 1024
        $region52: #{tpu_custom_call.1} parent=47 // pred_fallthru
          _
      $region48: #{tpu_custom_call.1} parent=5 // pred_fallthru
        _
    $region6: #{tpu_custom_call.1} parent=1 // loop_footer
      %s20 = sadd.s32 1, %s16
    $region7: #{tpu_custom_call.1} parent=1 // loop_footer_branch
      %15 = sbr.rel target = $region3
    $region8: #{tpu_custom_call.1} parent=1 // loop_exit
      _
    %570 = vsyncpa [#allocation3], 1
    %s571 = scalar_lea.sflag [#allocation3], 1
    %572 = vsyncpa %s571, 1
    %573 = vsyncpa [#allocation6], 1
    %574 = vsyncpa [#allocation4], 1
    %s575 = scalar_lea.sflag [#allocation4], 1
    %576 = vsyncpa %s575, 1

</llo_original>
